<compile_context>
chip_gen: v7x
topology: tpu7x:2x2x1
jax: 0.10.0
libtpu: 0.0.40
codegen_flags: <defaults>
</compile_context>

<pallas_src>
import functools

import jax
import jax.numpy as jnp
from jax.experimental import pallas as pl
from jax.experimental.pallas import tpu as pltpu


def _reweight_ce_kernel(inp_ref, side_ref, out_ref, *, n_rows, tm):
    pid = pl.program_id(0)

    x = inp_ref[...].astype(jnp.float32)          # [TM, C] logits (per-tile upcast)
    side = side_ref[...]                          # [TM, 2] f32: [class_as_f32, weight]

    TM, C = x.shape
    cls_col = side[:, 0:1].astype(jnp.int32)      # [TM, 1] chosen class per row
    w_col = side[:, 1:2]                          # [TM, 1] per-row weight

    # ---- -log_softmax(x)[i, cls[i]] without materializing logp ----
    m = jnp.max(x, axis=1, keepdims=True)                             # [TM, 1]
    shift = x - m                                                     # [TM, C]
    lse = jnp.log(jnp.sum(jnp.exp(shift), axis=1, keepdims=True))     # [TM, 1]
    col_ids = jax.lax.broadcasted_iota(jnp.int32, (TM, C), 1)
    picked = jnp.sum(jnp.where(col_ids == cls_col, shift, 0.0),
                     axis=1, keepdims=True)                           # [TM, 1]
    loss = (lse - picked) * w_col                                     # [TM, 1]

    # Zero rows past the end of the array (partial last tile reads undefined
    # VMEM; keep the select-mask so inf/NaN never reaches the output column).
    row_ids = pid * tm + jax.lax.broadcasted_iota(jnp.int32, (TM, 1), 0)
    out_ref[...] = jnp.where(row_ids < n_rows, loss, 0.0)


def _vmem_capacity_bytes():
    try:
        return int(pltpu.get_tpu_info().vmem_capacity_bytes)
    except Exception:
        return 64 * 1024 * 1024          # conservative (v7x per-TC)


def _vmem_limit_bytes():
    cap = _vmem_capacity_bytes()
    # ~44 MiB on 64 MiB chips (v7x), 64 MiB on 128 MiB chips (v5e/v6e).
    return int(min(cap * 11 // 16, 64 * 1024 * 1024))


def _choose_row_tile(n_rows, n_cols, in_itemsize):
    if n_rows <= 512:
        return n_rows                    # single tile: block == full array
    budget = _vmem_limit_bytes() - (2 << 20)          # headroom for side/out bufs
    # 2x double-buffered native-dtype input block + ~3 live [TM, C] f32 temps.
    per_row = n_cols * (2 * in_itemsize + 3 * 4)
    tm = budget // max(per_row, 1)
    tm = int(max(128, min(2048, (tm // 128) * 128)))
    return int(min(tm, n_rows))


def reweighting_ce(inp, target, pred_weight, reduction='mean', row_tile=None):
    """Pallas implementation of ReweightingCE.forward."""
    if reduction not in ('none', 'sum', 'mean'):
        raise ValueError('unrecognized option, expect reduction to be one of '
                         'none, mean, sum')
    inp = jnp.asarray(inp)                         # keep native dtype (bf16 ok)
    target = jnp.asarray(target)
    pred_weight = jnp.asarray(pred_weight, jnp.float32)
    N, C = inp.shape
    assert target.shape == (N, C)
    # The original `target.argmax(0)` advanced indexing only works when N == C.
    assert N == C, "ReweightingCE's argmax(0) indexing requires N == N_classes"

    # Row-coupled / gather pieces hoisted to XLA (tiny [N]-sized results):
    #   * argmax over the batch axis (the module's quirky target.argmax(0))
    #   * pred_weight[int(target[:,1])] where target[:,0] != 1 else 1
    # NOTE: the XLA gather clamps out-of-range class indices (PyTorch raises).
    cls = jnp.argmax(target, axis=0).astype(jnp.float32)              # [N]
    w_idx = target[:, 1].astype(jnp.int32)
    weights = jnp.where(target[:, 0].astype(jnp.float32) != 1.0,
                        pred_weight[w_idx], 1.0).astype(jnp.float32)  # [N]
    side = jnp.stack([cls, weights], axis=1)       # [N, 2] -> one narrow DMA/tile

    in_itemsize = jnp.dtype(inp.dtype).itemsize
    tm = int(row_tile) if row_tile is not None else _choose_row_tile(N, C, in_itemsize)
    grid = (pl.cdiv(N, tm),)

    kernel = functools.partial(_reweight_ce_kernel, n_rows=N, tm=tm)
    cost = pl.CostEstimate(
        flops=8 * N * C,
        transcendentals=N * C,
        bytes_accessed=int(N * C * in_itemsize + N * 2 * 4 + N * 4),
    )

    loss_col = pl.pallas_call(
        kernel,
        out_shape=jax.ShapeDtypeStruct((N, 1), jnp.float32),
        grid_spec=pltpu.PrefetchScalarGridSpec(
            num_scalar_prefetch=0,
            grid=grid,
            in_specs=[
                pl.BlockSpec((tm, C), lambda i: (i, 0)),   # logits row tile
                pl.BlockSpec((tm, 2), lambda i: (i, 0)),   # packed [class, weight]
            ],
            out_specs=pl.BlockSpec((tm, 1), lambda i: (i, 0)),
        ),
        compiler_params=pltpu.CompilerParams(
            dimension_semantics=("parallel",),
            vmem_limit_bytes=_vmem_limit_bytes(),
        ),
        cost_estimate=cost,
    )(inp, side)

    loss = loss_col[:, 0]
    if reduction == 'none':
        return loss
    if reduction == 'sum':
        return jnp.sum(loss)
    return jnp.mean(loss)


def _reference(inp, target, pred_weight, reduction='mean'):
    """Pure-JAX port of the PyTorch forward (for verification)."""
    inp = jnp.asarray(inp, jnp.float32)
    target = jnp.asarray(target, jnp.float32)
    N, C = target.shape
    argmax0 = jnp.argmax(target, axis=0)
    final_target = jnp.zeros_like(target).at[jnp.arange(N), argmax0].set(1.0)
    weights = jnp.where(target[:, 0] != 1.0,
                        pred_weight[target[:, 1].astype(jnp.int32)], 1.0)
    x = jax.nn.log_softmax(inp, axis=1)
    loss = jnp.sum(-x * final_target, axis=1) * weights
    if reduction == 'none':
        return loss
    if reduction == 'sum':
        return jnp.sum(loss)
    return jnp.mean(loss)


if __name__ == "__main__":
    def make_case(n):
        key = jax.random.PRNGKey(0)
        k1, k2, k3 = jax.random.split(key, 3)
        inp = jax.random.normal(k1, (n, n), jnp.float32)
        # Soft-label target: col 0 = per-row "weight flag", col 1 = class index
        # stored as float (mirrors the module's usage), remaining cols random.
        target = jax.random.uniform(k3, (n, n), jnp.float32)
        col0 = jnp.where(jnp.arange(n) % 2 == 0, 1.0, 0.5).astype(jnp.float32)
        col1 = jax.random.randint(k2, (n,), 0, n).astype(jnp.float32)
        target = target.at[:, 0].set(col0).at[:, 1].set(col1)
        pred_weight = jnp.arange(1, n + 1, dtype=jnp.float32) / n
        return inp, target, pred_weight

    def run_case(n, row_tile=None, dtype=jnp.float32, tol=1e-4):
        inp, target, pred_weight = make_case(n)
        inp = inp.astype(dtype)
        for reduction in ("mean", "sum", "none"):
            out = reweighting_ce(inp, target, pred_weight, reduction=reduction,
                                 row_tile=row_tile)
            out = jax.block_until_ready(out)
            ref = _reference(inp.astype(jnp.float32), target, pred_weight,
                             reduction=reduction)
            assert jnp.allclose(out, ref, rtol=tol, atol=tol), (
                n, reduction, out, ref)

    # Small single-tile case (N must equal N_classes; see note above).
    run_case(8)
    # Multi-tile case exercising the pipelined grid, the 'parallel' row axis
    # and the partial-last-tile masking (320 rows, tile 128 -> grid of 3).
    run_case(320, row_tile=128)
    # Native bf16 streaming with per-tile upcast inside the kernel.
    run_case(320, row_tile=128, dtype=jnp.bfloat16, tol=3e-2)

    print("KERNEL_OK")
</pallas_src>

<mosaic_0001>
module attributes {stable_mosaic.version = 11 : i64} {
  func.func @_reweight_ce_kernel(%arg0: i32, %arg1: memref<8x8xf32, #tpu.memory_space<vmem>>, %arg2: memref<8x2xf32, #tpu.memory_space<vmem>>, %arg3: memref<8x1xf32, #tpu.memory_space<vmem>>) attributes {dimension_semantics = [#tpu.dimension_semantics<parallel>], iteration_bounds = array<i64: 1>, scalar_prefetch = 0 : i64, scratch_operands = 0 : i64, tpu.core_type = #tpu.core_type<tc>, window_params = [{transform_indices = @transform_0, window_bounds = array<i64: 8, 8>}, {transform_indices = @transform_1, window_bounds = array<i64: 8, 2>}, {transform_indices = @transform_2, window_bounds = array<i64: 8, 1>}]} {
    %c0 = arith.constant 0 : index
    %c0_0 = arith.constant 0 : index
    %0 = vector.load %arg1[%c0, %c0_0] : memref<8x8xf32, #tpu.memory_space<vmem>>, vector<8x8xf32>
    %c0_1 = arith.constant 0 : index
    %c0_2 = arith.constant 0 : index
    %1 = vector.load %arg2[%c0_1, %c0_2] : memref<8x2xf32, #tpu.memory_space<vmem>>, vector<8x2xf32>
    %2 = vector.extract_strided_slice %1 {offsets = [0, 0], sizes = [8, 1], strides = [1, 1]} : vector<8x2xf32> to vector<8x1xf32>
    %3 = arith.fptosi %2 : vector<8x1xf32> to vector<8x1xi32>
    %4 = vector.extract_strided_slice %1 {offsets = [0, 1], sizes = [8, 1], strides = [1, 1]} : vector<8x2xf32> to vector<8x1xf32>
    %cst = arith.constant dense<0xFF800000> : vector<8xf32>
    %5 = vector.multi_reduction <maximumf>, %0, %cst [1] : vector<8x8xf32> to vector<8xf32>
    %6 = vector.shape_cast %5 : vector<8xf32> to vector<8x1xf32>
    %7 = vector.broadcast %6 : vector<8x1xf32> to vector<8x8xf32>
    %8 = arith.subf %0, %7 : vector<8x8xf32>
    %9 = math.exp %8 : vector<8x8xf32>
    %cst_3 = arith.constant dense<0.000000e+00> : vector<8xf32>
    %10 = vector.multi_reduction <add>, %9, %cst_3 [1] : vector<8x8xf32> to vector<8xf32>
    %11 = vector.shape_cast %10 : vector<8xf32> to vector<8x1xf32>
    %12 = math.log %11 : vector<8x1xf32>
    %13 = tpu.iota {dimensions = array<i32: 1>} : vector<8x8xi32>
    %14 = vector.broadcast %3 : vector<8x1xi32> to vector<8x8xi32>
    %15 = arith.cmpi eq, %13, %14 : vector<8x8xi32>
    %cst_4 = arith.constant 0.000000e+00 : f32
    %16 = vector.broadcast %cst_4 : f32 to vector<8x8xf32>
    %17 = arith.select %15, %8, %16 : vector<8x8xi1>, vector<8x8xf32>
    %cst_5 = arith.constant dense<0.000000e+00> : vector<8xf32>
    %18 = vector.multi_reduction <add>, %17, %cst_5 [1] : vector<8x8xf32> to vector<8xf32>
    %19 = vector.shape_cast %18 : vector<8xf32> to vector<8x1xf32>
    %20 = arith.subf %12, %19 : vector<8x1xf32>
    %21 = arith.mulf %20, %4 : vector<8x1xf32>
    %c8_i32 = arith.constant 8 : i32
    %22 = arith.muli %arg0, %c8_i32 : i32
    %23 = tpu.iota {dimensions = array<i32: 0>} : vector<8x1xi32>
    %24 = vector.broadcast %22 : i32 to vector<8x1xi32>
    %25 = arith.addi %24, %23 : vector<8x1xi32>
    %c8_i32_6 = arith.constant 8 : i32
    %26 = vector.broadcast %c8_i32_6 : i32 to vector<8x1xi32>
    %27 = arith.cmpi slt, %25, %26 : vector<8x1xi32>
    %cst_7 = arith.constant 0.000000e+00 : f32
    %28 = vector.broadcast %cst_7 : f32 to vector<8x1xf32>
    %29 = arith.select %27, %21, %28 : vector<8x1xi1>, vector<8x1xf32>
    %c0_8 = arith.constant 0 : index
    %c0_9 = arith.constant 0 : index
    %30 = vector.load %arg3[%c0_8, %c0_9] : memref<8x1xf32, #tpu.memory_space<vmem>>, vector<8x1xf32>
    tpu.vector_store %arg3[%c0_8, %c0_9], %29 {strides = array<i32>} : memref<8x1xf32, #tpu.memory_space<vmem>>, vector<8x1xf32>,
    return
  }
  func.func @transform_0(%arg0: i32) -> (i32, i32) {
    %c0_i32 = arith.constant 0 : i32
    %c0_i32_0 = arith.constant 0 : i32
    return %arg0, %c0_i32 : i32, i32
  }
  func.func @transform_1(%arg0: i32) -> (i32, i32) {
    %c0_i32 = arith.constant 0 : i32
    %c0_i32_0 = arith.constant 0 : i32
    return %arg0, %c0_i32 : i32, i32
  }
  func.func @transform_2(%arg0: i32) -> (i32, i32) {
    %c0_i32 = arith.constant 0 : i32
    %c0_i32_0 = arith.constant 0 : i32
    return %arg0, %c0_i32 : i32, i32
  }
}

</mosaic_0001>

<llo_original>
// kernel: tpu_custom_call.1
$region0: #{tpu_custom_call.1}
  #allocation0 [shape = 'u32[]', space=smem, size = 0x4, offset = 0x4, fixed_abs, tag = 'smem constant byte address 0x4 - core index']
  #allocation1 [shape = 'u32[144,128]{1,0:T(1,128)}', space=vmem, size = 0x12000, scoped, tag = 'internal scratch']
  %s0 = inlined_call_operand.vmem [shape: f32[8,8], index: 0, kind: input, shape index: {}]
  %s1 = inlined_call_operand.vmem [shape: f32[8,2], index: 1, kind: input, shape index: {}]
  %s2 = inlined_call_operand.vmem [shape: f32[8,1], index: 2, kind: output, shape index: {}]
  %s3 = sld [smem:[#allocation0]]
  $region18: #{tpu_custom_call.1} parent=0
    _
  %s5 = ssub.s32 1, %s3
  %s6 = scalar_select 0, %s5, %s3
  // Predicated region
  $region2: #{tpu_custom_call.1} parent=0 // pred_check
    _
  $region3: #{tpu_custom_call.1} parent=0 // pred_check_branch
    %8 = sbr.rel (0) target = $region5
  $region4: #{tpu_custom_call.1} parent=0 // pred_region
    _
  $region5: #{tpu_custom_call.1} parent=0 // pred_fallthru
    _
  // Predicated region
  $region6: #{tpu_custom_call.1} parent=0 // pred_check
    _
  $region7: #{tpu_custom_call.1} parent=0 // pred_check_branch
    %10 = sbr.rel (0) target = $region9
  $region8: #{tpu_custom_call.1} parent=0 // pred_region
    _
  $region9: #{tpu_custom_call.1} parent=0 // pred_fallthru
    _
  %v11 = vld [vmem:[%s0] sm:$0xff]
  %v12 = vld [vmem:[%s1] sm:$0xff]
  %v13 = vcvt.f32.s32.to.zero.pseudo %v12
  %vm14 = vcmask 64512
  %v15 = vsel %vm14, %v11, -inf
  %16 = vmax.xlane.f32.xlu0 %v15
  %v17 = vpop.xlane.xlu0 %16
  %v18 = vsub.f32 %v11, %v17
  %v19 = vmul.f32 %v18, 1.442695
  %v20 = vpow.pop %v19
  %v21 = vsel %vm14, %v20, 0.0
  %22 = vadd.xlane.f32.xlu0 %v21
  %v23 = vpop.xlane.xlu0 %22
  %v24 = vlog2.pop %v23
  %v25 = vmul.f32 %v24, 0.6931472
  %v26 = vlaneseq
  %v27 = vand.u32 %v26, 127
  %28 = vset.pattern.permute.xlu0 0
  %29 = vperm.xlu0 %28, %v13
  %v30 = vpop.permute.xlu0 %29
  %vm31 = vcmp.eq.s32.totalorder %v27, %v30
  %v32 = vsel %vm31, %v18, 0.0
  %v33 = vsel %vm14, %v32, 0.0
  %34 = vadd.xlane.f32.xlu0 %v33
  %v35 = vpop.xlane.xlu0 %34
  %v36 = vsub.f32 %v25, %v35
  %v37 = vmul.f32 %v36, %v12
  %s38 = smul.u32 0, 8
  %v39 = vlaneseq
  %v40 = vshrl.u32 %v39, 7
  %v41 = vstv %s38
  %v42 = vadd.s32 %v41, %v40
  %vm43 = vcmp.lt.s32.totalorder %v42, 8
  %v44 = vsel %vm43, %v37, 0.0
  %46 = vrot.lane.b32.xlu0 %v44, 127
  %v47 = vpop.permute.xlu0 %46
  %vm49 = vcmask 7168
  %50 = vst.msk [vmem:[%s2] sm:$0xff] %vm49, %v47
  // Predicated region
  $region10: #{tpu_custom_call.1} parent=0 // pred_check
    _
  $region11: #{tpu_custom_call.1} parent=0 // pred_check_branch
    %52 = sbr.rel (0) target = $region13
  $region12: #{tpu_custom_call.1} parent=0 // pred_region
    _
  $region13: #{tpu_custom_call.1} parent=0 // pred_fallthru
    _
  // Predicated region
  $region14: #{tpu_custom_call.1} parent=0 // pred_check
    _
  $region15: #{tpu_custom_call.1} parent=0 // pred_check_branch
    %54 = sbr.rel (0) target = $region17
  $region16: #{tpu_custom_call.1} parent=0 // pred_region
    _
  $region17: #{tpu_custom_call.1} parent=0 // pred_fallthru
    _

</llo_original>
